<compile_context>
chip_gen: v7x
topology: tpu7x:2x2x1
jax: 0.10.0
libtpu: 0.0.40
codegen_flags: <defaults>
</compile_context>

<pallas_src>
import math

import jax
import jax.numpy as jnp
from jax.experimental import pallas as pl
from jax.experimental.pallas import tpu as pltpu

_LANES = 128


def _round_up(v, m):
    return ((v + m - 1) // m) * m


def cheb_gcn_kernel(x_t0_ref, adj_ref, x_k_ref, w01_ref, b_ref, o_ref, t1_acc):
    """One (node-tile, contraction-tile) step of ChebConv(K=2) + ReLU.

    x_t0_ref : [TN, F]   x rows of this node tile (T0 term), bf16
    adj_ref  : [TN, TK]  adjacency slab (rows: node tile, cols: k slab), bf16
    x_k_ref  : [TK, F]   x rows of this contraction slab (for T1 = adj@x), bf16
    w01_ref  : [2F, Cp]  vstack(W0, W1), columns zero-padded to Cp lanes, bf16
    b_ref    : [1, Cp]   bias, zero-padded, f32
    o_ref    : [TN, Cp]  lane-dense output tile, f32
    t1_acc   : [TN, F]   f32 VMEM accumulator for T1 = adj @ x
    """
    k = pl.program_id(1)

    @pl.when(k == 0)
    def _init():
        t1_acc[...] = jnp.zeros_like(t1_acc)

    # Partial graph propagation on the MXU: t1 += adj[:, k-slab] @ x[k-slab, :]
    t1_acc[...] += jnp.dot(adj_ref[...], x_k_ref[...],
                           preferred_element_type=jnp.float32)

    @pl.when(k == pl.num_programs(1) - 1)
    def _finalize():
        # Fused K=2F feature transform: [T0 | T1] @ [[W0], [W1]].
        feats = jnp.concatenate(
            [x_t0_ref[...], t1_acc[...].astype(jnp.bfloat16)], axis=-1)
        out = jnp.dot(feats, w01_ref[...], preferred_element_type=jnp.float32)
        out = out + b_ref[...]                       # f32 epilogue
        o_ref[...] = jnp.maximum(out, 0.0).astype(o_ref.dtype)


def cheb_gcn1_forward(x, adj, w0, w1, b, *, tile_n=None, tile_k=None):
    """ChebGCN1.forward: relu(ChebConv_{K=2}(x, adj)) -> [N, nclass] float32."""
    N, F_dim = x.shape
    C = w0.shape[1]
    compute_dtype = jnp.bfloat16

    # Node tile (parallel axis): multiple of 8; aim for >= 2 grid steps so both
    # v7x TensorCores get work even for small graphs.
    if tile_n is None:
        tile_n = 256 if N > 512 else max(8, _round_up(-(-N // 2), 8))
    tile_n = max(8, _round_up(int(tile_n), 8))
    n_pad = _round_up(N, tile_n)

    # Contraction tile (arbitrary axis): whole padded N for small graphs, else
    # a 128-aligned slab so only [tile_n, tile_k] of adj is VMEM-resident.
    if tile_k is None:
        tile_k = n_pad if n_pad <= 2048 else 512
    tile_k = int(tile_k)
    if tile_k >= n_pad:
        tile_k = n_pad
    else:
        tile_k = _round_up(tile_k, _LANES)
        n_pad = _round_up(n_pad, (tile_n * tile_k) // math.gcd(tile_n, tile_k))

    # Lane-dense output: pad the class dim up to a multiple of 128 lanes.
    c_pad = _round_up(C, _LANES)

    x_p = jnp.pad(x.astype(compute_dtype), ((0, n_pad - N), (0, 0)))
    adj_p = jnp.pad(adj.astype(compute_dtype),
                    ((0, n_pad - N), (0, n_pad - N)))
    w01_p = jnp.pad(jnp.concatenate([w0, w1], axis=0).astype(compute_dtype),
                    ((0, 0), (0, c_pad - C)))
    b_p = jnp.pad(jnp.asarray(b, jnp.float32).reshape(1, C),
                  ((0, 0), (0, c_pad - C)))

    grid = (n_pad // tile_n, n_pad // tile_k)

    # Scoped-VMEM budget from the actual block footprint (double-buffered
    # streams + constants + accumulator) with 2x headroom; floor at 32 MiB,
    # cap safely below v7x's 64 MiB physical VMEM.
    bb = jnp.dtype(compute_dtype).itemsize
    vmem_bytes = (
        2 * tile_n * F_dim * bb            # x rows for T0 (double-buffered)
        + 2 * tile_k * F_dim * bb          # x rows for the contraction slab
        + 2 * tile_n * tile_k * bb         # adjacency slab
        + 2 * 2 * F_dim * c_pad * bb       # fused W01
        + 2 * c_pad * 4                    # bias (f32)
        + 2 * tile_n * c_pad * 4           # output tile (f32)
        + tile_n * F_dim * 4               # t1 accumulator scratch
    )
    vmem_limit = int(min(max(2 * vmem_bytes, 32 * 1024 * 1024),
                         48 * 1024 * 1024))

    out_padded = pl.pallas_call(
        cheb_gcn_kernel,
        out_shape=jax.ShapeDtypeStruct((n_pad, c_pad), jnp.float32),
        grid_spec=pltpu.PrefetchScalarGridSpec(
            num_scalar_prefetch=0,
            grid=grid,
            in_specs=[
                pl.BlockSpec((tile_n, F_dim), lambda i, k: (i, 0)),    # x (T0)
                pl.BlockSpec((tile_n, tile_k), lambda i, k: (i, k)),   # adj
                pl.BlockSpec((tile_k, F_dim), lambda i, k: (k, 0)),    # x (T1)
                pl.BlockSpec((2 * F_dim, c_pad), lambda i, k: (0, 0)),  # W01
                pl.BlockSpec((1, c_pad), lambda i, k: (0, 0)),          # bias
            ],
            out_specs=pl.BlockSpec((tile_n, c_pad), lambda i, k: (i, 0)),
            scratch_shapes=[pltpu.VMEM((tile_n, F_dim), jnp.float32)],
        ),
        compiler_params=pltpu.CompilerParams(
            dimension_semantics=("parallel", "arbitrary"),
            vmem_limit_bytes=vmem_limit),
    )(x_p, adj_p, x_p, w01_p, b_p)

    return out_padded[:N, :C]


def _reference(x, adj, w0, w1, b):
    t1 = adj @ x
    return jnp.maximum(x @ w0 + t1 @ w1 + b, 0.0)


if __name__ == "__main__":
    key = jax.random.PRNGKey(0)
    k_x, k_a, k_w0, k_w1 = jax.random.split(key, 4)

    # Small transductive-style problem: 64 nodes, nfeat=32, nclass=16, K=2.
    N, nfeat, nclass = 64, 32, 16

    # Node features.
    x = jax.random.normal(k_x, (N, nfeat), dtype=jnp.float32)

    # Dense symmetric adjacency with self-loops, sym-normalized
    # (D^{-1/2} (A + I) D^{-1/2}) -- stands in for the ChebConv scaled
    # Laplacian operator L_hat.
    a_raw = (jax.random.uniform(k_a, (N, N)) < 0.1).astype(jnp.float32)
    a_sym = jnp.maximum(a_raw, a_raw.T) + jnp.eye(N, dtype=jnp.float32)
    deg = jnp.sum(a_sym, axis=1)
    d_inv_sqrt = 1.0 / jnp.sqrt(deg)
    adj = a_sym * d_inv_sqrt[:, None] * d_inv_sqrt[None, :]

    # Deterministic glorot-style init for the K=2 Chebyshev weights; zero bias.
    scale = jnp.sqrt(6.0 / (nfeat + nclass))
    w0 = jax.random.uniform(k_w0, (nfeat, nclass), minval=-scale, maxval=scale,
                            dtype=jnp.float32)
    w1 = jax.random.uniform(k_w1, (nfeat, nclass), minval=-scale, maxval=scale,
                            dtype=jnp.float32)
    b = jnp.zeros((1, nclass), dtype=jnp.float32)

    out = jax.block_until_ready(cheb_gcn1_forward(x, adj, w0, w1, b))

    ref = _reference(x, adj, w0, w1, b)
    assert out.shape == (N, nclass)
    # bf16 MXU operands with f32 accumulate/epilogue -> loose tolerance vs the
    # full-f32 reference.
    max_err = float(jnp.max(jnp.abs(out - ref)))
    assert max_err < 0.1, f"max abs err {max_err}"

    print("KERNEL_OK")
</pallas_src>

<mosaic_0001>
module attributes {stable_mosaic.version = 11 : i64} {
  func.func @cheb_gcn_kernel(%arg0: i32, %arg1: i32, %arg2: memref<32x32xbf16, #tpu.memory_space<vmem>>, %arg3: memref<32x64xbf16, #tpu.memory_space<vmem>>, %arg4: memref<64x32xbf16, #tpu.memory_space<vmem>>, %arg5: memref<64x128xbf16, #tpu.memory_space<vmem>>, %arg6: memref<1x128xf32, #tpu.memory_space<vmem>>, %arg7: memref<32x128xf32, #tpu.memory_space<vmem>>, %arg8: memref<32x32xf32, #tpu.memory_space<vmem>>) attributes {dimension_semantics = [#tpu.dimension_semantics<parallel>, #tpu.dimension_semantics<arbitrary>], iteration_bounds = array<i64: 2, 1>, scalar_prefetch = 0 : i64, scratch_operands = 1 : i64, tpu.core_type = #tpu.core_type<tc>, window_params = [{transform_indices = @transform_0, window_bounds = array<i64: 32, 32>}, {transform_indices = @transform_1, window_bounds = array<i64: 32, 64>}, {transform_indices = @transform_2, window_bounds = array<i64: 64, 32>}, {pipeline_mode = #tpu.pipeline_mode<synchronous>, transform_indices = @transform_3, window_bounds = array<i64: 64, 128>}, {pipeline_mode = #tpu.pipeline_mode<synchronous>, transform_indices = @transform_4, window_bounds = array<i64: 1, 128>}, {transform_indices = @transform_5, window_bounds = array<i64: 32, 128>}]} {
    %c0_i32 = arith.constant 0 : i32
    %0 = arith.cmpi eq, %arg1, %c0_i32 : i32
    %1 = arith.extui %0 : i1 to i32
    %c0_i32_0 = arith.constant 0 : i32
    %2 = arith.cmpi ne, %1, %c0_i32_0 : i32
    scf.if %2 {
      %cst_10 = arith.constant 0.000000e+00 : f32
      %12 = vector.broadcast %cst_10 : f32 to vector<32x32xf32>
      %c0_11 = arith.constant 0 : index
      %c0_12 = arith.constant 0 : index
      %13 = vector.load %arg8[%c0_11, %c0_12] : memref<32x32xf32, #tpu.memory_space<vmem>>, vector<32x32xf32>
      tpu.vector_store %arg8[%c0_11, %c0_12], %12 {strides = array<i32>} : memref<32x32xf32, #tpu.memory_space<vmem>>, vector<32x32xf32>,
    } else {
    }
    %c0 = arith.constant 0 : index
    %c0_1 = arith.constant 0 : index
    %3 = vector.load %arg8[%c0, %c0_1] : memref<32x32xf32, #tpu.memory_space<vmem>>, vector<32x32xf32>
    %c0_2 = arith.constant 0 : index
    %c0_3 = arith.constant 0 : index
    %4 = vector.load %arg3[%c0_2, %c0_3] : memref<32x64xbf16, #tpu.memory_space<vmem>>, vector<32x64xbf16>
    %c0_4 = arith.constant 0 : index
    %c0_5 = arith.constant 0 : index
    %5 = vector.load %arg4[%c0_4, %c0_5] : memref<64x32xbf16, #tpu.memory_space<vmem>>, vector<64x32xbf16>
    %cst = arith.constant dense<0.000000e+00> : vector<32x32xf32>
    %6 = tpu.matmul %4, %5, %cst {dimension_numbers = #tpu.dot_dimension_numbers<[1], [0], [0], [1], [0, 0, 1, 1], [], []>} : vector<32x64xbf16>, vector<64x32xbf16>, vector<32x32xf32> -> vector<32x32xf32>
    %7 = arith.addf %3, %6 : vector<32x32xf32>
    %c0_6 = arith.constant 0 : index
    %c0_7 = arith.constant 0 : index
    %8 = vector.load %arg8[%c0_6, %c0_7] : memref<32x32xf32, #tpu.memory_space<vmem>>, vector<32x32xf32>
    tpu.vector_store %arg8[%c0_6, %c0_7], %7 {strides = array<i32>} : memref<32x32xf32, #tpu.memory_space<vmem>>, vector<32x32xf32>,
    %c0_i32_8 = arith.constant 0 : i32
    %9 = arith.cmpi eq, %arg1, %c0_i32_8 : i32
    %10 = arith.extui %9 : i1 to i32
    %c0_i32_9 = arith.constant 0 : i32
    %11 = arith.cmpi ne, %10, %c0_i32_9 : i32
    scf.if %11 {
      %c0_10 = arith.constant 0 : index
      %c0_11 = arith.constant 0 : index
      %12 = vector.load %arg2[%c0_10, %c0_11] : memref<32x32xbf16, #tpu.memory_space<vmem>>, vector<32x32xbf16>
      %c0_12 = arith.constant 0 : index
      %c0_13 = arith.constant 0 : index
      %13 = vector.load %arg8[%c0_12, %c0_13] : memref<32x32xf32, #tpu.memory_space<vmem>>, vector<32x32xf32>
      %14 = arith.truncf %13 : vector<32x32xf32> to vector<32x32xbf16>
      %15 = tpu.concatenate %12, %14 in 1 : vector<32x32xbf16>, vector<32x32xbf16> -> vector<32x64xbf16>
      %c0_14 = arith.constant 0 : index
      %c0_15 = arith.constant 0 : index
      %16 = vector.load %arg5[%c0_14, %c0_15] : memref<64x128xbf16, #tpu.memory_space<vmem>>, vector<64x128xbf16>
      %cst_16 = arith.constant dense<0.000000e+00> : vector<32x128xf32>
      %17 = tpu.matmul %15, %16, %cst_16 {dimension_numbers = #tpu.dot_dimension_numbers<[1], [0], [0], [1], [0, 0, 1, 1], [], []>} : vector<32x64xbf16>, vector<64x128xbf16>, vector<32x128xf32> -> vector<32x128xf32>
      %c0_17 = arith.constant 0 : index
      %c0_18 = arith.constant 0 : index
      %18 = vector.load %arg6[%c0_17, %c0_18] : memref<1x128xf32, #tpu.memory_space<vmem>>, vector<1x128xf32>
      %19 = vector.broadcast %18 : vector<1x128xf32> to vector<32x128xf32>
      %20 = arith.addf %17, %19 : vector<32x128xf32>
      %cst_19 = arith.constant 0.000000e+00 : f32
      %21 = vector.broadcast %cst_19 : f32 to vector<32x128xf32>
      %22 = arith.maximumf %20, %21 : vector<32x128xf32>
      %c0_20 = arith.constant 0 : index
      %c0_21 = arith.constant 0 : index
      %23 = vector.load %arg7[%c0_20, %c0_21] : memref<32x128xf32, #tpu.memory_space<vmem>>, vector<32x128xf32>
      tpu.vector_store %arg7[%c0_20, %c0_21], %22 {strides = array<i32>} : memref<32x128xf32, #tpu.memory_space<vmem>>, vector<32x128xf32>,
    } else {
    }
    return
  }
  func.func @transform_0(%arg0: i32, %arg1: i32) -> (i32, i32) {
    %c0_i32 = arith.constant 0 : i32
    %c0_i32_0 = arith.constant 0 : i32
    return %arg0, %c0_i32 : i32, i32
  }
  func.func @transform_1(%arg0: i32, %arg1: i32) -> (i32, i32) {
    %c0_i32 = arith.constant 0 : i32
    return %arg0, %arg1 : i32, i32
  }
  func.func @transform_2(%arg0: i32, %arg1: i32) -> (i32, i32) {
    %c0_i32 = arith.constant 0 : i32
    %c0_i32_0 = arith.constant 0 : i32
    return %arg1, %c0_i32 : i32, i32
  }
  func.func @transform_3(%arg0: i32, %arg1: i32) -> (i32, i32) {
    %c0_i32 = arith.constant 0 : i32
    %c0_i32_0 = arith.constant 0 : i32
    %c0_i32_1 = arith.constant 0 : i32
    return %c0_i32, %c0_i32_0 : i32, i32
  }
  func.func @transform_4(%arg0: i32, %arg1: i32) -> (i32, i32) {
    %c0_i32 = arith.constant 0 : i32
    %c0_i32_0 = arith.constant 0 : i32
    %c0_i32_1 = arith.constant 0 : i32
    return %c0_i32, %c0_i32_0 : i32, i32
  }
  func.func @transform_5(%arg0: i32, %arg1: i32) -> (i32, i32) {
    %c0_i32 = arith.constant 0 : i32
    %c0_i32_0 = arith.constant 0 : i32
    return %arg0, %c0_i32 : i32, i32
  }
}

</mosaic_0001>

<llo_original>
// kernel: tpu_custom_call.1
$region0: #{tpu_custom_call.1}
  #allocation0 [shape = 'u32[]', space=smem, size = 0x4, offset = 0x4, fixed_abs, tag = 'smem constant byte address 0x4 - core index']
  #allocation1 [shape = 'u32[144,128]{1,0:T(1,128)}', space=vmem, size = 0x12000, scoped, tag = 'internal scratch']
  #allocation2 [shape = 'f32[32,32]{1,0:T(8,128)}', space=vmem, size = 0x4000, scoped, tag = 'scratch operand']
  %s0 = inlined_call_operand.vmem [shape: bf16[64,32], index: 0, kind: input, shape index: {}]
  %s1 = inlined_call_operand.vmem [shape: bf16[64,64], index: 1, kind: input, shape index: {}]
  %s2 = inlined_call_operand.vmem [shape: bf16[64,32], index: 2, kind: input, shape index: {}]
  %s3 = inlined_call_operand.vmem [shape: bf16[64,128], index: 3, kind: input, shape index: {}]
  %s4 = inlined_call_operand.vmem [shape: f32[1,128], index: 4, kind: input, shape index: {}]
  %s5 = inlined_call_operand.hbm [shape: f32[64,128], index: 5, kind: output, shape index: {}]
  %s6 = sld [smem:[#allocation0]]
  $region61: #{tpu_custom_call.1} parent=0
    _
  %s8 = ssub.s32 1, %s6
  %s9 = scalar_select 0, %s8, %s6
  $region1: #{tpu_custom_call.1} parent=0
    #allocation3 [shape = 'u8[32768]{0}', space=vmem, size = 0x8000, scoped, tag = 'output window, operand 0']
    #allocation4 [shape = 's32[2]{0}', space=sflag, size = 0x8, scoped, tag = 'scoped memory for tpu_custom_call.1']
    %10 = vsyncpa [#allocation4], 0
    %s11 = scalar_lea.sflag [#allocation4], 1
    %12 = vsyncpa %s11, 0
    loop: start=0, step=1, limit=4
    $region2: #{tpu_custom_call.1} parent=1 // loop_pre_header
      _
    $region3: #{tpu_custom_call.1} parent=1 // loop_header
      %s14 = sphi 0, %s18
      %p15 = scmp.ge.s32.totalorder %s14, 4
      %s21 = sphi 0, %s33
      %s22 = sphi 0, %s29
      %s23 = sphi 0, %s21
      %s24 = sphi 0, %s22
      %s25 = sphi 0, %s23
      %s26 = sphi 0, %s24
      %s36 = sphi 0, %s38
      %s39 = sphi 0, %s36
      %s40 = sphi 0, %s39
      %s56 = sphi 0, %s40
      %s64 = sphi 0, %s66
      %s67 = sphi 0, %s64
      %s68 = sphi 0, %s67
      %s84 = sphi 0, %s68
      %s90 = sphi 0, %s92
      %s93 = sphi 0, %s90
      %s94 = sphi 0, %s93
      %s110 = sphi 0, %s94
      %s114 = sphi 0, %s114
      %s116 = sphi 0, %s114
      %s117 = sphi 0, %s116
      %s131 = sphi 0, %s117
      %s135 = sphi 0, %s135
      %s137 = sphi 0, %s135
      %s138 = sphi 0, %s137
      %s152 = sphi 0, %s138
      %s158 = sphi 0, %s160
      %s161 = sphi 0, %s158
      %s162 = sphi 0, %s161
      %s178 = sphi 0, %s162
    $region4: #{tpu_custom_call.1} parent=1 // loop_header_branch
      %17 = sbr.rel (%p15) target = $region8
    $region5: #{tpu_custom_call.1} parent=1 // loop_body
      %s19 = ssub.s32 %s14, 1
      %s20 = ssub.s32 %s14, 2
      %s27 = sadd.s32 1, %s22
      %p28 = scmp.ge.s32.totalorder %s27, 1
      %s29 = scalar_select %p28, 0, %s27
      %s30 = sadd.s32 1, %s21
      %s31 = scalar_select %p28, %s30, %s21
      %p32 = scmp.ge.s32.totalorder %s31, 2
      %s33 = scalar_select %p32, 0, %s31
      %s34 = ssub.s32 %s21, %s33
      %p35 = scmp.eq.s32.totalorder %s34, 0
      %s37 = sadd.s32 %s36, 1
      %s38 = scalar_select %p35, %s36, %s37
      %p41 = pneg %p35
      %p42 = scmp.eq.s32.totalorder %s14, 1
      %p43 = por %p41, %p42
      %p44 = scmp.ne.s32.totalorder %s36, %s39
      %p45 = scmp.eq.s32.totalorder %s14, 0
      %p46 = por %p44, %p45
      %p47 = scmp.ne.s32.totalorder %s36, %s39
      %p48 = scmp.eq.s32.totalorder %s19, 1
      %p49 = por %p47, %p48
      %p50 = scmp.ne.s32.totalorder %s39, %s40
      %p51 = scmp.eq.s32.totalorder %s19, 0
      %p52 = por %p50, %p51
      %p53 = scmp.ne.s32.totalorder %s39, %s40
      %p54 = scmp.eq.s32.totalorder %s20, 1
      %p55 = por %p53, %p54
      %p57 = scmp.ne.s32.totalorder %s40, %s56
      %p58 = scmp.eq.s32.totalorder %s20, 0
      %p59 = por %p57, %p58
      %s60 = ssub.s32 %s21, %s33
      %s61 = ssub.s32 %s22, %s29
      %s62 = sor.u32 %s60, %s61
      %p63 = scmp.eq.s32.totalorder %s62, 0
      %s65 = sadd.s32 %s64, 1
      %s66 = scalar_select %p63, %s64, %s65
      %p69 = pneg %p63
      %p70 = scmp.eq.s32.totalorder %s14, 1
      %p71 = por %p69, %p70
      %p72 = scmp.ne.s32.totalorder %s64, %s67
      %p73 = scmp.eq.s32.totalorder %s14, 0
      %p74 = por %p72, %p73
      %p75 = scmp.ne.s32.totalorder %s64, %s67
      %p76 = scmp.eq.s32.totalorder %s19, 1
      %p77 = por %p75, %p76
      %p78 = scmp.ne.s32.totalorder %s67, %s68
      %p79 = scmp.eq.s32.totalorder %s19, 0
      %p80 = por %p78, %p79
      %p81 = scmp.ne.s32.totalorder %s67, %s68
      %p82 = scmp.eq.s32.totalorder %s20, 1
      %p83 = por %p81, %p82
      %p85 = scmp.ne.s32.totalorder %s68, %s84
      %p86 = scmp.eq.s32.totalorder %s20, 0
      %p87 = por %p85, %p86
      %s88 = ssub.s32 %s22, %s29
      %p89 = scmp.eq.s32.totalorder %s88, 0
      %s91 = sadd.s32 %s90, 1
      %s92 = scalar_select %p89, %s90, %s91
      %p95 = pneg %p89
      %p96 = scmp.eq.s32.totalorder %s14, 1
      %p97 = por %p95, %p96
      %p98 = scmp.ne.s32.totalorder %s90, %s93
      %p99 = scmp.eq.s32.totalorder %s14, 0
      %p100 = por %p98, %p99
      %p101 = scmp.ne.s32.totalorder %s90, %s93
      %p102 = scmp.eq.s32.totalorder %s19, 1
      %p103 = por %p101, %p102
      %p104 = scmp.ne.s32.totalorder %s93, %s94
      %p105 = scmp.eq.s32.totalorder %s19, 0
      %p106 = por %p104, %p105
      %p107 = scmp.ne.s32.totalorder %s93, %s94
      %p108 = scmp.eq.s32.totalorder %s20, 1
      %p109 = por %p107, %p108
      %p111 = scmp.ne.s32.totalorder %s94, %s110
      %p112 = scmp.eq.s32.totalorder %s20, 0
      %p113 = por %p111, %p112
      %s115 = sadd.s32 %s114, 1
      %p118 = scmp.eq.s32.totalorder %s14, 1
      %p119 = scmp.ne.s32.totalorder %s114, %s116
      %p120 = scmp.eq.s32.totalorder %s14, 0
      %p121 = por %p119, %p120
      %p122 = scmp.ne.s32.totalorder %s114, %s116
      %p123 = scmp.eq.s32.totalorder %s19, 1
      %p124 = por %p122, %p123
      %p125 = scmp.ne.s32.totalorder %s116, %s117
      %p126 = scmp.eq.s32.totalorder %s19, 0
      %p127 = por %p125, %p126
      %p128 = scmp.ne.s32.totalorder %s116, %s117
      %p129 = scmp.eq.s32.totalorder %s20, 1
      %p130 = por %p128, %p129
      %p132 = scmp.ne.s32.totalorder %s117, %s131
      %p133 = scmp.eq.s32.totalorder %s20, 0
      %p134 = por %p132, %p133
      %s136 = sadd.s32 %s135, 1
      %p139 = scmp.eq.s32.totalorder %s14, 1
      %p140 = scmp.ne.s32.totalorder %s135, %s137
      %p141 = scmp.eq.s32.totalorder %s14, 0
      %p142 = por %p140, %p141
      %p143 = scmp.ne.s32.totalorder %s135, %s137
      %p144 = scmp.eq.s32.totalorder %s19, 1
      %p145 = por %p143, %p144
      %p146 = scmp.ne.s32.totalorder %s137, %s138
      %p147 = scmp.eq.s32.totalorder %s19, 0
      %p148 = por %p146, %p147
      %p149 = scmp.ne.s32.totalorder %s137, %s138
      %p150 = scmp.eq.s32.totalorder %s20, 1
      %p151 = por %p149, %p150
      %p153 = scmp.ne.s32.totalorder %s138, %s152
      %p154 = scmp.eq.s32.totalorder %s20, 0
      %p155 = por %p153, %p154
      %s156 = ssub.s32 %s21, %s33
      %p157 = scmp.eq.s32.totalorder %s156, 0
      %s159 = sadd.s32 %s158, 1
      %s160 = scalar_select %p157, %s158, %s159
      %p163 = pneg %p157
      %p164 = scmp.eq.s32.totalorder %s14, 1
      %p165 = por %p163, %p164
      %p166 = scmp.ne.s32.totalorder %s158, %s161
      %p167 = scmp.eq.s32.totalorder %s14, 0
      %p168 = por %p166, %p167
      %p169 = scmp.ne.s32.totalorder %s158, %s161
      %p170 = scmp.eq.s32.totalorder %s19, 1
      %p171 = por %p169, %p170
      %p172 = scmp.ne.s32.totalorder %s161, %s162
      %p173 = scmp.eq.s32.totalorder %s19, 0
      %p174 = por %p172, %p173
      %p175 = scmp.ne.s32.totalorder %s161, %s162
      %p176 = scmp.eq.s32.totalorder %s20, 1
      %p177 = por %p175, %p176
      %p179 = scmp.ne.s32.totalorder %s162, %s178
      %p180 = scmp.eq.s32.totalorder %s20, 0
      %p181 = por %p179, %p180
      %p182 = scmp.le.s32.totalorder 1, %s14
      %p183 = scmp.lt.s32.totalorder %s14, 3
      %p184 = pnand %p182, %p183
      %p185 = pneg %p184
      // Predicated region
      $region9: #{tpu_custom_call.1} parent=5 // pred_check
        _
      $region10: #{tpu_custom_call.1} parent=5 // pred_check_branch
        %187 = sbr.rel (%p184) target = $region12
      $region11: #{tpu_custom_call.1} parent=5 // pred_region
        %s188 = ssub.s32 %s14, 1
        // Predicated region
        $region13: #{tpu_custom_call.1} parent=11 // pred_check
          %p189 = pneg %p106
        $region14: #{tpu_custom_call.1} parent=11 // pred_check_branch
          %191 = sbr.rel (%p189) target = $region16
        $region15: #{tpu_custom_call.1} parent=11 // pred_region
          %s192 = smul.u32 8, %s24
          %p193 = scmp.lt.s32.totalorder %s192, 7
          %s194 = scalar_select %p193, %s192, 7
          %s195 = smul.addr %s194, 4
          %s196 = scalar_lea.vmem %s2, %s195
          %s197 = smul.u32 8, %s24
        $region16: #{tpu_custom_call.1} parent=11 // pred_fallthru
          _
        // Predicated region
        $region17: #{tpu_custom_call.1} parent=11 // pred_check
          %p198 = pneg %p127
        $region18: #{tpu_custom_call.1} parent=11 // pred_check_branch
          %200 = sbr.rel (%p198) target = $region20
        $region19: #{tpu_custom_call.1} parent=11 // pred_region
          _
        $region20: #{tpu_custom_call.1} parent=11 // pred_fallthru
          _
        // Predicated region
        $region21: #{tpu_custom_call.1} parent=11 // pred_check
          %p201 = pneg %p148
        $region22: #{tpu_custom_call.1} parent=11 // pred_check_branch
          %203 = sbr.rel (%p201) target = $region24
        $region23: #{tpu_custom_call.1} parent=11 // pred_region
          _
        $region24: #{tpu_custom_call.1} parent=11 // pred_fallthru
          _
      $region12: #{tpu_custom_call.1} parent=5 // pred_fallthru
        _
      %p204 = scmp.lt.s32.totalorder %s14, 2
      // Predicated region
      $region25: #{tpu_custom_call.1} parent=5 // pred_check
        %p205 = pneg %p204
      $region26: #{tpu_custom_call.1} parent=5 // pred_check_branch
        %207 = sbr.rel (%p205) target = $region28
      $region27: #{tpu_custom_call.1} parent=5 // pred_region
        // Predicated region
        $region29: #{tpu_custom_call.1} parent=27 // pred_check
          %p208 = pneg %p46
        $region30: #{tpu_custom_call.1} parent=27 // pred_check_branch
          %210 = sbr.rel (%p208) target = $region32
        $region31: #{tpu_custom_call.1} parent=27 // pred_region
          %s211 = smul.u32 4, %s21
          %p212 = scmp.lt.s32.totalorder %s211, 7
          %s213 = scalar_select %p212, %s211, 7
          %s214 = smul.addr %s213, 4
          %s215 = scalar_lea.vmem %s0, %s214
          %s216 = smul.u32 4, %s21
        $region32: #{tpu_custom_call.1} parent=27 // pred_fallthru
          _
        // Predicated region
        $region33: #{tpu_custom_call.1} parent=27 // pred_check
          %p217 = pneg %p74
        $region34: #{tpu_custom_call.1} parent=27 // pred_check_branch
          %219 = sbr.rel (%p217) target = $region36
        $region35: #{tpu_custom_call.1} parent=27 // pred_region
          %s220 = smul.u32 4, %s21
          %p221 = scmp.lt.s32.totalorder %s220, 7
          %s222 = scalar_select %p221, %s220, 7
          %p223 = scmp.lt.s32.totalorder %s22, 0
          %s224 = scalar_select %p223, %s22, 0
          %s225 = sadd.s32 %s224, %s222
          %s226 = smul.addr %s225, 4
          %s227 = scalar_lea.vmem %s1, %s226
          %s228 = smul.u32 4, %s21
        $region36: #{tpu_custom_call.1} parent=27 // pred_fallthru
          _
      $region28: #{tpu_custom_call.1} parent=5 // pred_fallthru
        _
      %p229 = scmp.le.s32.totalorder 1, %s14
      %p230 = scmp.lt.s32.totalorder %s14, 3
      %p231 = pnand %p229, %p230
      %p232 = pneg %p231
      // Predicated region
      $region37: #{tpu_custom_call.1} parent=5 // pred_check
        _
      $region38: #{tpu_custom_call.1} parent=5 // pred_check_branch
        %234 = sbr.rel (%p231) target = $region40
      $region39: #{tpu_custom_call.1} parent=5 // pred_region
        %s235 = ssub.s32 %s14, 1
        %s236 = smul.u32 4, %s23
        %p237 = scmp.lt.s32.totalorder %s236, 7
        %s238 = scalar_select %p237, %s236, 7
        %s239 = smul.addr %s238, 4
        %s240 = scalar_lea.vmem %s0, %s239
        %p241 = pneg %p52
        %p242 = pneg %p49
        %s243 = smul.u32 4, %s23
        %p244 = scmp.lt.s32.totalorder %s243, 7
        %s245 = scalar_select %p244, %s243, 7
        %p246 = scmp.lt.s32.totalorder %s24, 0
        %s247 = scalar_select %p246, %s24, 0
        %s248 = sadd.s32 %s247, %s245
        %s249 = smul.addr %s248, 4
        %s250 = scalar_lea.vmem %s1, %s249
        %p251 = pneg %p80
        %p252 = pneg %p77
        %s253 = smul.u32 8, %s24
        %p254 = scmp.lt.s32.totalorder %s253, 7
        %s255 = scalar_select %p254, %s253, 7
        %s256 = smul.addr %s255, 4
        %s257 = scalar_lea.vmem %s2, %s256
        %p258 = pneg %p106
        %p259 = pneg %p103
        %p260 = pneg %p127
        %p261 = pneg %p124
        %p262 = pneg %p148
        %p263 = pneg %p145
        %p264 = pneg %p174
        %p265 = pneg %p171
        %s266 = sand.u32 %s161, 1
        %s267 = scalar_lea.sflag [#allocation4], %s266
        %s268 = sand.u32 %s161, 1
        %s269 = smul.addr %s268, 32
        %s270 = scalar_lea.vmem [#allocation3], %s269
        %s271 = smul.u32 4, %s23
        %p272 = scmp.lt.s32.totalorder %s271, 7
        %s273 = scalar_select %p272, %s271, 7
        %s274 = smul.addr %s273, 4
        %s275 = scalar_lea.vmem %s0, %s274
        %s276 = smul.u32 4, %s23
        %s277 = smul.u32 4, %s23
        %p278 = scmp.lt.s32.totalorder %s277, 7
        %s279 = scalar_select %p278, %s277, 7
        %p280 = scmp.lt.s32.totalorder %s24, 0
        %s281 = scalar_select %p280, %s24, 0
        %s282 = sadd.s32 %s281, %s279
        %s283 = smul.addr %s282, 4
        %s284 = scalar_lea.vmem %s1, %s283
        %s285 = smul.u32 4, %s23
        %s286 = smul.u32 8, %s24
        %p287 = scmp.lt.s32.totalorder %s286, 7
        %s288 = scalar_select %p287, %s286, 7
        %s289 = smul.addr %s288, 4
        %s290 = scalar_lea.vmem %s2, %s289
        %s291 = smul.u32 8, %s24
        %s292 = smul.u32 4, %s23
        %p294 = scmp.eq.s32.totalorder %s24, 0
        // Predicated region
        $region41: #{tpu_custom_call.1} parent=39 // pred_check
          %p295 = pneg %p294
        $region42: #{tpu_custom_call.1} parent=39 // pred_check_branch
          %297 = sbr.rel (%p295) target = $region44
        $region43: #{tpu_custom_call.1} parent=39 // pred_region
          %vm298 = vcmask 261120
          %299 = vst.msk [vmem:[#allocation2] sm:$0xff] %vm298, 0.0
          %300 = vst.msk [vmem:[#allocation2 + $0x8] sm:$0xff] %vm298, 0.0
          %301 = vst.msk [vmem:[#allocation2 + $0x10] sm:$0xff] %vm298, 0.0
          %302 = vst.msk [vmem:[#allocation2 + $0x18] sm:$0xff] %vm298, 0.0
        $region44: #{tpu_custom_call.1} parent=39 // pred_fallthru
          _
        %v303 = vld [vmem:[#allocation2] sm:$0xff]
        %v304 = vld [vmem:[#allocation2 + $0x8] sm:$0xff]
        %v305 = vld [vmem:[#allocation2 + $0x10] sm:$0xff]
        %v306 = vld [vmem:[#allocation2 + $0x18] sm:$0xff]
        %v307 = vld [vmem:[%s284] sm:$0xf]
        %v308 = vld [vmem:[%s284 + $0x4] sm:$0xf]
        %v309 = vld [vmem:[%s284 + $0x8] sm:$0xf]
        %v310 = vld [vmem:[%s284 + $0xc] sm:$0xf]
        %v311 = vld [vmem:[%s290] sm:$0xf]
        %v312 = vld [vmem:[%s290 + $0x4] sm:$0xf]
        %v313 = vld [vmem:[%s290 + $0x8] sm:$0xf]
        %v314 = vld [vmem:[%s290 + $0xc] sm:$0xf]
        %v315 = vld [vmem:[%s290 + $0x10] sm:$0xf]
        %v316 = vld [vmem:[%s290 + $0x14] sm:$0xf]
        %v317 = vld [vmem:[%s290 + $0x18] sm:$0xf]
        %v318 = vld [vmem:[%s290 + $0x1c] sm:$0xf]
        %v323 = vunpack.c.l.b16 %v307
        %v324 = vunpack.c.l.b16 %v308
        %v325 = vunpack.c.l.b16 %v309
        %v326 = vunpack.c.l.b16 %v310
        %v327 = vpack.c.b16 %v324, %v323
        %v328 = vpack.c.b16 %v326, %v325
        %v337 = vunpack.c.l.b16 %v311
        %v338 = vunpack.c.l.b16 %v312
        %v339 = vunpack.c.l.b16 %v313
        %v340 = vunpack.c.l.b16 %v314
        %v341 = vunpack.c.l.b16 %v315
        %v342 = vunpack.c.l.b16 %v316
        %v343 = vunpack.c.l.b16 %v317
        %v344 = vunpack.c.l.b16 %v318
        %v345 = vpack.c.b16 %v338, %v337
        %v346 = vpack.c.b16 %v340, %v339
        %v347 = vpack.c.b16 %v342, %v341
        %v348 = vpack.c.b16 %v344, %v343
        %vm353 = vcmask 523264
        %v355 = vsel %vm353, %v327, 0
        %v358 = vsel %vm353, %v328, 0
        %360 = vmatprep.subr.bf16.mxu0 0
        %361 = vmatpush1.bf16.msra.mxu0 %v345
        %362 = vmatprep.subr.bf16.mxu0 0
        %363 = vmatpush1.bf16.msra.mxu0 %v346
        %364 = vmatprep.subr.bf16.mxu0 0
        %365 = vmatpush1.bf16.msra.mxu0 %v347
        %366 = vmatprep.subr.bf16.mxu0 0
        %367 = vmatpush1.bf16.msra.mxu0 %v348
        %368 = vmatprep.subr.bf16.mxu0 0
        %369 = vmatpush1.bf16.msra.mxu0 0
        %370 = vmatprep.subr.bf16.mxu0 0
        %371 = vmatpush1.bf16.msra.mxu0 0
        %372 = vmatprep.subr.bf16.mxu0 0
        %373 = vmatpush1.bf16.msra.mxu0 0
        %374 = vmatprep.subr.bf16.mxu0 0
        %375 = vmatpush1.bf16.msra.mxu0 0
        %376 = vmatprep.subr.bf16.mxu0 0
        %377 = vmatpush1.bf16.msra.mxu0 0
        %378 = vmatprep.subr.bf16.mxu0 0
        %379 = vmatpush1.bf16.msra.mxu0 0
        %380 = vmatprep.subr.bf16.mxu0 0
        %381 = vmatpush1.bf16.msra.mxu0 0
        %382 = vmatprep.subr.bf16.mxu0 0
        %383 = vmatpush1.bf16.msra.mxu0 0
        %384 = vmatprep.subr.bf16.mxu0 0
        %385 = vmatpush1.bf16.msra.mxu0 0
        %386 = vmatprep.subr.bf16.mxu0 0
        %387 = vmatpush1.bf16.msra.mxu0 0
        %388 = vmatprep.subr.bf16.mxu0 0
        %389 = vmatpush1.bf16.msra.mxu0 0
        %390 = vmatprep.subr.bf16.mxu0 0
        %391 = vmatpush1.bf16.msra.mxu0 0
        %392 = vmatprep.mubr.bf16.mxu0 0
        %393 = vmatmul.mubr.bf16.gmra.mrb[0].mxu0 %v355
        %v394 = vpop.f32.mrb[0].mxu0
        %v395 = vadd.f32 0.0, %v394
        %v396 = vpop.f32.mrb[0].mxu0
        %v397 = vpop.f32.mrb[0].mxu0
        %v398 = vadd.f32 0.0, %v397
        %v399 = vpop.f32.mrb[0].mxu0
        %400 = vmatprep.mubr.bf16.mxu0 0
        %401 = vmatmul.mubr.bf16.gmra.mrb[0].mxu0 %v358
        %v402 = vpop.f32.mrb[0].mxu0
        %v403 = vadd.f32 0.0, %v402
        %v404 = vpop.f32.mrb[0].mxu0
        %v405 = vpop.f32.mrb[0].mxu0
        %v406 = vadd.f32 0.0, %v405
        %v407 = vpop.f32.mrb[0].mxu0
        %408 = vdwg.mxu0
        %v409 = vadd.f32 %v303, %v395
        %v410 = vadd.f32 %v304, %v398
        %v411 = vadd.f32 %v305, %v403
        %v412 = vadd.f32 %v306, %v406
        %vm413 = vcmask 261120
        %414 = vst.msk [vmem:[#allocation2] sm:$0xff] %vm413, %v409
        %415 = vst.msk [vmem:[#allocation2 + $0x8] sm:$0xff] %vm413, %v410
        %416 = vst.msk [vmem:[#allocation2 + $0x10] sm:$0xff] %vm413, %v411
        %417 = vst.msk [vmem:[#allocation2 + $0x18] sm:$0xff] %vm413, %v412
        // Predicated region
        $region45: #{tpu_custom_call.1} parent=39 // pred_check
          %p418 = pneg %p294
        $region46: #{tpu_custom_call.1} parent=39 // pred_check_branch
          %420 = sbr.rel (%p418) target = $region48
        $region47: #{tpu_custom_call.1} parent=39 // pred_region
          %v421 = vld [vmem:[%s275] sm:$0xf]
          %v422 = vld [vmem:[%s275 + $0x4] sm:$0xf]
          %v423 = vld [vmem:[%s275 + $0x8] sm:$0xf]
          %v424 = vld [vmem:[%s275 + $0xc] sm:$0xf]
          %v425 = vld [vmem:[#allocation2] sm:$0xff]
          %v426 = vld [vmem:[#allocation2 + $0x8] sm:$0xff]
          %v427 = vld [vmem:[#allocation2 + $0x10] sm:$0xff]
          %v428 = vld [vmem:[#allocation2 + $0x18] sm:$0xff]
          %v429 = vpack.c.bf16 %v426, %v425
          %v430 = vpack.c.bf16 %v428, %v427
          %v435 = vunpack.c.l.b16 %v421
          %v436 = vunpack.c.l.b16 %v422
          %v437 = vunpack.c.l.b16 %v423
          %v438 = vunpack.c.l.b16 %v424
          %v439 = vpack.c.b16 %v436, %v435
          %v440 = vpack.c.b16 %v438, %v437
          %443 = vrot.lane.b32.xlu0 %v429, 32
          %v444 = vpop.permute.xlu0 %443
          %445 = vrot.lane.b32.xlu0 %v430, 32
          %v446 = vpop.permute.xlu0 %445
          %v449 = vsel %vm413, %v439, %v444
          %v452 = vsel %vm413, %v440, %v446
          %v453 = vld [vmem:[%s3] sm:$0xf]
          %v454 = vld [vmem:[%s3 + $0x4] sm:$0xf]
          %v455 = vld [vmem:[%s3 + $0x8] sm:$0xf]
          %v456 = vld [vmem:[%s3 + $0xc] sm:$0xf]
          %v457 = vld [vmem:[%s3 + $0x10] sm:$0xf]
          %v458 = vld [vmem:[%s3 + $0x14] sm:$0xf]
          %v459 = vld [vmem:[%s3 + $0x18] sm:$0xf]
          %v460 = vld [vmem:[%s3 + $0x1c] sm:$0xf]
          %v461 = vld [vmem:[%s4] sm:$0x1]
          %v463 = vlaneseq
          %v464 = vshrl.u32 %v463, 7
          %v465 = vsub.s32 0, %v464
          %v466 = vrot.slane %v461, %v465
          %v476 = vunpack.c.l.b16 %v453
          %v477 = vunpack.c.l.b16 %v454
          %v478 = vunpack.c.l.b16 %v455
          %v479 = vunpack.c.l.b16 %v456
          %v480 = vunpack.c.l.b16 %v457
          %v481 = vunpack.c.l.b16 %v458
          %v482 = vunpack.c.l.b16 %v459
          %v483 = vunpack.c.l.b16 %v460
          %v484 = vpack.c.b16 %v477, %v476
          %v485 = vpack.c.b16 %v479, %v478
          %v486 = vpack.c.b16 %v481, %v480
          %v487 = vpack.c.b16 %v483, %v482
          %v492 = vsel %vm353, %v449, 0
          %v494 = vsel %vm353, %v452, 0
          %496 = vmatprep.subr.bf16.mxu0 0
          %497 = vmatpush1.bf16.msra.mxu0 %v484
          %498 = vmatprep.subr.bf16.mxu0 0
          %499 = vmatpush1.bf16.msra.mxu0 %v485
          %500 = vmatprep.subr.bf16.mxu0 0
          %501 = vmatpush1.bf16.msra.mxu0 %v486
          %502 = vmatprep.subr.bf16.mxu0 0
          %503 = vmatpush1.bf16.msra.mxu0 %v487
          %504 = vmatprep.subr.bf16.mxu0 0
          %505 = vmatpush1.bf16.msra.mxu0 0
          %506 = vmatprep.subr.bf16.mxu0 0
          %507 = vmatpush1.bf16.msra.mxu0 0
          %508 = vmatprep.subr.bf16.mxu0 0
          %509 = vmatpush1.bf16.msra.mxu0 0
          %510 = vmatprep.subr.bf16.mxu0 0
          %511 = vmatpush1.bf16.msra.mxu0 0
          %512 = vmatprep.subr.bf16.mxu0 0
          %513 = vmatpush1.bf16.msra.mxu0 0
          %514 = vmatprep.subr.bf16.mxu0 0
          %515 = vmatpush1.bf16.msra.mxu0 0
          %516 = vmatprep.subr.bf16.mxu0 0
          %517 = vmatpush1.bf16.msra.mxu0 0
          %518 = vmatprep.subr.bf16.mxu0 0
          %519 = vmatpush1.bf16.msra.mxu0 0
          %520 = vmatprep.subr.bf16.mxu0 0
          %521 = vmatpush1.bf16.msra.mxu0 0
          %522 = vmatprep.subr.bf16.mxu0 0
          %523 = vmatpush1.bf16.msra.mxu0 0
          %524 = vmatprep.subr.bf16.mxu0 0
          %525 = vmatpush1.bf16.msra.mxu0 0
          %526 = vmatprep.subr.bf16.mxu0 0
          %527 = vmatpush1.bf16.msra.mxu0 0
          %528 = vmatprep.mubr.bf16.mxu0 0
          %529 = vmatmul.mubr.bf16.gmra.mrb[0].mxu0 %v492
          %v530 = vpop.f32.mrb[0].mxu0
          %v531 = vadd.f32 %v466, %v530
          %v532 = vpop.f32.mrb[0].mxu0
          %v533 = vpop.f32.mrb[0].mxu0
          %v534 = vadd.f32 %v466, %v533
          %v535 = vpop.f32.mrb[0].mxu0
          %536 = vmatprep.mubr.bf16.mxu0 0
          %537 = vmatmul.mubr.bf16.gmra.mrb[0].mxu0 %v494
          %v538 = vpop.f32.mrb[0].mxu0
          %v539 = vadd.f32 %v466, %v538
          %v540 = vpop.f32.mrb[0].mxu0
          %v541 = vpop.f32.mrb[0].mxu0
          %v542 = vadd.f32 %v466, %v541
          %v543 = vpop.f32.mrb[0].mxu0
          %544 = vdwg.mxu0
          %v545 = vmax.f32 %v531, 0.0
          %v546 = vmax.f32 %v534, 0.0
          %v547 = vmax.f32 %v539, 0.0
          %v548 = vmax.f32 %v542, 0.0
          %549 = vst [vmem:[%s270] sm:$0xff] %v545
          %550 = vst [vmem:[%s270 + $0x8] sm:$0xff] %v546
          %551 = vst [vmem:[%s270 + $0x10] sm:$0xff] %v547
          %552 = vst [vmem:[%s270 + $0x18] sm:$0xff] %v548
        $region48: #{tpu_custom_call.1} parent=39 // pred_fallthru
          _
        %s553 = sand.u32 %s161, 1
        %s554 = scalar_lea.sflag [#allocation4], %s553
        %s555 = sand.u32 %s161, 1
        %s556 = smul.addr %s555, 32
        %s557 = scalar_lea.vmem [#allocation3], %s556
        // Predicated region
        $region49: #{tpu_custom_call.1} parent=39 // pred_check
          %p558 = pneg %p171
        $region50: #{tpu_custom_call.1} parent=39 // pred_check_branch
          %560 = sbr.rel (%p558) target = $region52
        $region51: #{tpu_custom_call.1} parent=39 // pred_region
          %s561 = smul.u32 4, %s23
          %s563 = ssub.s32 512, 512
          %564 = vsyncadd %s554, %s563
          %s565 = smul.addr %s561, 128
          %s566 = scalar_lea.hbm %s5, %s565
          %s567 = sshll.u32 %s557, 4
          %s568 = int_to_ptr.vmem [resolvable:$true] %s567
          %573 = dma.vmem_to_hbm [thread:$0]  %s568, 512, %s566, %s554, 128, 128, 8
        $region52: #{tpu_custom_call.1} parent=39 // pred_fallthru
          _
      $region40: #{tpu_custom_call.1} parent=5 // pred_fallthru
        _
      %p574 = scmp.le.s32.totalorder 2, %s14
      // Predicated region
      $region53: #{tpu_custom_call.1} parent=5 // pred_check
        %p575 = pneg %p574
      $region54: #{tpu_custom_call.1} parent=5 // pred_check_branch
        %577 = sbr.rel (%p575) target = $region56
      $region55: #{tpu_custom_call.1} parent=5 // pred_region
        %s578 = ssub.s32 %s14, 2
        // Predicated region
        $region57: #{tpu_custom_call.1} parent=55 // pred_check
          %p579 = pneg %p177
        $region58: #{tpu_custom_call.1} parent=55 // pred_check_branch
          %581 = sbr.rel (%p579) target = $region60
        $region59: #{tpu_custom_call.1} parent=55 // pred_region
          %s582 = sand.u32 %s162, 1
          %s583 = scalar_lea.sflag [#allocation4], %s582
          %s584 = sand.u32 %s162, 1
          %s585 = smul.addr %s584, 32
          %s586 = scalar_lea.vmem [#allocation3], %s585
          %587 = dma.done %s583, 512
        $region60: #{tpu_custom_call.1} parent=55 // pred_fallthru
          _
      $region56: #{tpu_custom_call.1} parent=5 // pred_fallthru
        _
    $region6: #{tpu_custom_call.1} parent=1 // loop_footer
      %s18 = sadd.s32 1, %s14
    $region7: #{tpu_custom_call.1} parent=1 // loop_footer_branch
      %13 = sbr.rel target = $region3
    $region8: #{tpu_custom_call.1} parent=1 // loop_exit
      _
    %588 = vsyncpa [#allocation4], 1
    %s589 = scalar_lea.sflag [#allocation4], 1
    %590 = vsyncpa %s589, 1

</llo_original>
